<compile_context>
chip_gen: v7x
topology: tpu7x:2x2x1
jax: 0.10.0
libtpu: 0.0.40
codegen_flags: <defaults>
</compile_context>

<pallas_src>
import jax
import jax.numpy as jnp
from jax import lax
from jax.experimental import pallas as pl
from jax.experimental.pallas import tpu as pltpu

NUM_INPUTS = 8
HIDDEN_UNITS = 20
OUTPUTS = 4

# Contract the last dim of both operands (A @ B.T) -> feature-major result.
_NT_DIMS = (((1,), (1,)), ((), ()))

# Conservative per-batch-element VMEM estimate (bytes) used to size tiles and
# the scoped-VMEM limit:
#   x tile   : double buffered, minor dim (8) lane-padded to 128, f32
#   out tile : double buffered, (4 -> 8 sublanes) x tile lanes, f32
#   scratch  : generous budget for the live (20 -> 24, tile) temporaries
_VMEM_BYTES_PER_ELEM = (2 * 128 * 4) + (2 * 8 * 4) + (8 * 24 * 4)   # = 1856


def _round_up(n, m):
    return ((n + m - 1) // m) * m


def _vmem_budget_bytes():
    """VMEM we are willing to let Mosaic use for this kernel (with headroom)."""
    try:
        cap = int(pltpu.get_tpu_info().vmem_capacity_bytes)  # 128 MiB v5e/v6e, 64 MiB/TC v7x
    except Exception:
        cap = 64 << 20  # assume the smallest generation if the query fails
    return max(24 << 20, min(cap - (24 << 20), 96 << 20))


def _select_tile(batch, tile_cap):
    """Balanced lane-tile: per-step padding waste stays below 128 rows."""
    tile_cap = max(128, _round_up(int(tile_cap), 128))
    if batch <= tile_cap:
        return _round_up(batch, 128)
    steps = -(-batch // tile_cap)
    return _round_up(-(-batch // steps), 128)


def cavenet_kernel(x_ref, w1_ref, b1_ref, w2_ref, b2_ref, w3_ref, b3_ref, o_ref):
    """One batch tile: x_ref is (tile_b, NUM_INPUTS), o_ref is (OUTPUTS, tile_b)."""
    cd = w1_ref.dtype  # MXU compute dtype (f32 or bf16); accumulation stays f32.

    x = x_ref[...].astype(cd)                       # (tile_b, 8), batch on sublanes
    # inputLayer + ReLU.  NT dot_general contracts the tiny feature axis of both
    # operands, producing the feature-major (HIDDEN, tile_b) activation; the
    # relayout of x happens on the otherwise-idle XLU.
    h = lax.dot_general(w1_ref[...], x, _NT_DIMS,
                        preferred_element_type=jnp.float32)
    h = jnp.maximum(h + b1_ref[...], 0.0).astype(cd)

    # hiddenLayer + ReLU, applied TWICE with the SAME weights (as in the module).
    w2 = w2_ref[...]
    b2 = b2_ref[...]
    h = jnp.maximum(
        jnp.dot(w2, h, preferred_element_type=jnp.float32) + b2, 0.0).astype(cd)
    h = jnp.maximum(
        jnp.dot(w2, h, preferred_element_type=jnp.float32) + b2, 0.0).astype(cd)

    # outputLayer (no activation); lane-dense feature-major store.
    o_ref[...] = (
        jnp.dot(w3_ref[...], h, preferred_element_type=jnp.float32) + b3_ref[...]
    ).astype(o_ref.dtype)


def cavenet_forward_pallas(x, params, *, tile_cap=None,
                           compute_dtype=jnp.bfloat16):
    """Pallas forward. x: (B, NUM_INPUTS). Returns (B, OUTPUTS) f32."""
    w1, b1, w2, b2, w3, b3 = params
    B = x.shape[0]
    assert x.shape[1] == NUM_INPUTS

    # Tiny batches: pad the row axis up to one full 128-lane tile so no block
    # exceeds its array extent.  For B >= 128 nothing is padded; the ragged
    # tail block is masked by Pallas.
    if B < 128:
        x_in = jnp.pad(x, ((0, 128 - B), (0, 0)))
        b_arr = 128
    else:
        x_in = x
        b_arr = B

    vmem_budget = _vmem_budget_bytes()
    if tile_cap is None:
        # Target ~75% of the budget for the tile-dependent footprint.
        tile_cap = (3 * vmem_budget) // (4 * _VMEM_BYTES_PER_ELEM)
        tile_cap = max(2048, min(32768, int(tile_cap)))
    tile_b = _select_tile(b_arr, tile_cap)
    grid = (pl.cdiv(b_arr, tile_b),)

    vmem_need = tile_b * _VMEM_BYTES_PER_ELEM + (4 << 20)
    vmem_limit = int(min(100 << 20, max(vmem_budget, vmem_need)))

    # Weights in the compute dtype (tiny, VMEM-resident); biases stay f32.
    w1c, w2c, w3c = (w.astype(compute_dtype) for w in (w1, w2, w3))

    out_t = pl.pallas_call(
        cavenet_kernel,
        out_shape=jax.ShapeDtypeStruct((OUTPUTS, b_arr), jnp.float32),
        grid=grid,
        in_specs=[
            pl.BlockSpec((tile_b, NUM_INPUTS), lambda i: (i, 0)),   # x rows (pipelined)
            pl.BlockSpec((HIDDEN_UNITS, NUM_INPUTS), lambda i: (0, 0)),  # w1 (resident)
            pl.BlockSpec((HIDDEN_UNITS, 1), lambda i: (0, 0)),           # b1
            pl.BlockSpec((HIDDEN_UNITS, HIDDEN_UNITS), lambda i: (0, 0)),  # w2
            pl.BlockSpec((HIDDEN_UNITS, 1), lambda i: (0, 0)),           # b2
            pl.BlockSpec((OUTPUTS, HIDDEN_UNITS), lambda i: (0, 0)),     # w3
            pl.BlockSpec((OUTPUTS, 1), lambda i: (0, 0)),                # b3
        ],
        out_specs=pl.BlockSpec((OUTPUTS, tile_b), lambda i: (0, i)),
        compiler_params=pltpu.CompilerParams(
            dimension_semantics=("parallel",),       # megacore split on v7x
            vmem_limit_bytes=vmem_limit),
    )(x_in, w1c, b1, w2c, b2, w3c, b3)

    if b_arr != B:
        out_t = out_t[:, :B]
    return out_t.T


def reference_forward(x, params):
    """Plain-JAX reference (row-major, exactly the torch forward)."""
    w1, b1, w2, b2, w3, b3 = params
    h = jnp.maximum(x @ w1.T + b1[:, 0], 0.0)
    h = jnp.maximum(h @ w2.T + b2[:, 0], 0.0)
    h = jnp.maximum(h @ w2.T + b2[:, 0], 0.0)
    return h @ w3.T + b3[:, 0]


def cavenet_forward(x, params, **kwargs):
    """Dispatcher: tiny batches are cheaper as a fused XLA matmul chain."""
    if x.shape[0] < 512:
        return reference_forward(x, params)
    return cavenet_forward_pallas(x, params, **kwargs)


def init_params(key):
    """PyTorch nn.Linear-style init: U(-1/sqrt(fan_in), +1/sqrt(fan_in)).

    Weights keep the PyTorch (out_features, in_features) orientation; biases
    are stored as (out_features, 1) so they broadcast along the lane axis.
    """
    def linear(k, fan_in, fan_out):
        kw, kb = jax.random.split(k)
        bound = 1.0 / jnp.sqrt(float(fan_in))
        w = jax.random.uniform(kw, (fan_out, fan_in), jnp.float32, -bound, bound)
        b = jax.random.uniform(kb, (fan_out, 1), jnp.float32, -bound, bound)
        return w, b

    k1, k2, k3 = jax.random.split(key, 3)
    w1, b1 = linear(k1, NUM_INPUTS, HIDDEN_UNITS)
    w2, b2 = linear(k2, HIDDEN_UNITS, HIDDEN_UNITS)
    w3, b3 = linear(k3, HIDDEN_UNITS, OUTPUTS)
    return (w1, b1, w2, b2, w3, b3)


if __name__ == "__main__":
    key = jax.random.PRNGKey(0)
    kx, kp = jax.random.split(key)
    params = init_params(kp)

    # Small batch (< one 128-lane tile): exercises the pad-to-128 path. f32.
    B_small = 8
    x_small = jax.random.normal(kx, (B_small, NUM_INPUTS), dtype=jnp.float32)
    out_small = jax.block_until_ready(
        cavenet_forward_pallas(x_small, params, compute_dtype=jnp.float32))
    ref_small = reference_forward(x_small, params)
    assert out_small.shape == (B_small, OUTPUTS)
    assert jnp.allclose(out_small, ref_small, atol=1e-5, rtol=1e-5), \
        "Pallas kernel mismatch vs reference (f32, small batch)"

    # Batch that is not a multiple of the tile: multi-step ragged-tail grid. f32.
    B_big = 300
    x_big = jax.random.normal(kx, (B_big, NUM_INPUTS), dtype=jnp.float32)
    out_big = jax.block_until_ready(
        cavenet_forward_pallas(x_big, params, tile_cap=128,
                               compute_dtype=jnp.float32))
    ref_big = reference_forward(x_big, params)
    assert out_big.shape == (B_big, OUTPUTS)
    assert jnp.allclose(out_big, ref_big, atol=1e-5, rtol=1e-5), \
        "Pallas kernel mismatch vs reference (f32, ragged tiled batch)"

    # Default path: auto tile size, bf16 compute / f32 accumulation.
    out_def = jax.block_until_ready(cavenet_forward_pallas(x_big, params))
    assert out_def.shape == (B_big, OUTPUTS)
    assert jnp.allclose(out_def, ref_big, atol=1e-1, rtol=1e-1), \
        "Pallas kernel mismatch vs reference (default bf16 compute)"

    print("KERNEL_OK")
</pallas_src>

<mosaic_0001>
module attributes {stable_mosaic.version = 11 : i64} {
  func.func @cavenet_kernel(%arg0: i32, %arg1: memref<128x8xf32, #tpu.memory_space<vmem>>, %arg2: memref<20x8xf32, #tpu.memory_space<vmem>>, %arg3: memref<20x1xf32, #tpu.memory_space<vmem>>, %arg4: memref<20x20xf32, #tpu.memory_space<vmem>>, %arg5: memref<20x1xf32, #tpu.memory_space<vmem>>, %arg6: memref<4x20xf32, #tpu.memory_space<vmem>>, %arg7: memref<4x1xf32, #tpu.memory_space<vmem>>, %arg8: memref<4x128xf32, #tpu.memory_space<vmem>>) attributes {dimension_semantics = [#tpu.dimension_semantics<parallel>], iteration_bounds = array<i64: 1>, scalar_prefetch = 0 : i64, scratch_operands = 0 : i64, tpu.core_type = #tpu.core_type<tc>, window_params = [{transform_indices = @transform_0, window_bounds = array<i64: 128, 8>}, {pipeline_mode = #tpu.pipeline_mode<synchronous>, transform_indices = @transform_1, window_bounds = array<i64: 20, 8>}, {pipeline_mode = #tpu.pipeline_mode<synchronous>, transform_indices = @transform_2, window_bounds = array<i64: 20, 1>}, {pipeline_mode = #tpu.pipeline_mode<synchronous>, transform_indices = @transform_3, window_bounds = array<i64: 20, 20>}, {pipeline_mode = #tpu.pipeline_mode<synchronous>, transform_indices = @transform_4, window_bounds = array<i64: 20, 1>}, {pipeline_mode = #tpu.pipeline_mode<synchronous>, transform_indices = @transform_5, window_bounds = array<i64: 4, 20>}, {pipeline_mode = #tpu.pipeline_mode<synchronous>, transform_indices = @transform_6, window_bounds = array<i64: 4, 1>}, {transform_indices = @transform_7, window_bounds = array<i64: 4, 128>}]} {
    %c0 = arith.constant 0 : index
    %c0_0 = arith.constant 0 : index
    %0 = vector.load %arg1[%c0, %c0_0] : memref<128x8xf32, #tpu.memory_space<vmem>>, vector<128x8xf32>
    %c0_1 = arith.constant 0 : index
    %c0_2 = arith.constant 0 : index
    %1 = vector.load %arg2[%c0_1, %c0_2] : memref<20x8xf32, #tpu.memory_space<vmem>>, vector<20x8xf32>
    %cst = arith.constant dense<0.000000e+00> : vector<20x128xf32>
    %2 = tpu.matmul %1, %0, %cst {dimension_numbers = #tpu.dot_dimension_numbers<[1], [1], [0], [0], [0, 0, 1, 0], [], []>} : vector<20x8xf32>, vector<128x8xf32>, vector<20x128xf32> -> vector<20x128xf32>
    %c0_3 = arith.constant 0 : index
    %c0_4 = arith.constant 0 : index
    %3 = vector.load %arg3[%c0_3, %c0_4] : memref<20x1xf32, #tpu.memory_space<vmem>>, vector<20x1xf32>
    %4 = vector.broadcast %3 : vector<20x1xf32> to vector<20x128xf32>
    %5 = arith.addf %2, %4 : vector<20x128xf32>
    %cst_5 = arith.constant 0.000000e+00 : f32
    %6 = vector.broadcast %cst_5 : f32 to vector<20x128xf32>
    %7 = arith.maximumf %5, %6 : vector<20x128xf32>
    %c0_6 = arith.constant 0 : index
    %c0_7 = arith.constant 0 : index
    %8 = vector.load %arg4[%c0_6, %c0_7] : memref<20x20xf32, #tpu.memory_space<vmem>>, vector<20x20xf32>
    %c0_8 = arith.constant 0 : index
    %c0_9 = arith.constant 0 : index
    %9 = vector.load %arg5[%c0_8, %c0_9] : memref<20x1xf32, #tpu.memory_space<vmem>>, vector<20x1xf32>
    %cst_10 = arith.constant dense<0.000000e+00> : vector<20x128xf32>
    %10 = tpu.matmul %8, %7, %cst_10 {dimension_numbers = #tpu.dot_dimension_numbers<[1], [0], [0], [1], [0, 0, 1, 1], [], []>} : vector<20x20xf32>, vector<20x128xf32>, vector<20x128xf32> -> vector<20x128xf32>
    %11 = vector.broadcast %9 : vector<20x1xf32> to vector<20x128xf32>
    %12 = arith.addf %10, %11 : vector<20x128xf32>
    %cst_11 = arith.constant 0.000000e+00 : f32
    %13 = vector.broadcast %cst_11 : f32 to vector<20x128xf32>
    %14 = arith.maximumf %12, %13 : vector<20x128xf32>
    %cst_12 = arith.constant dense<0.000000e+00> : vector<20x128xf32>
    %15 = tpu.matmul %8, %14, %cst_12 {dimension_numbers = #tpu.dot_dimension_numbers<[1], [0], [0], [1], [0, 0, 1, 1], [], []>} : vector<20x20xf32>, vector<20x128xf32>, vector<20x128xf32> -> vector<20x128xf32>
    %16 = vector.broadcast %9 : vector<20x1xf32> to vector<20x128xf32>
    %17 = arith.addf %15, %16 : vector<20x128xf32>
    %cst_13 = arith.constant 0.000000e+00 : f32
    %18 = vector.broadcast %cst_13 : f32 to vector<20x128xf32>
    %19 = arith.maximumf %17, %18 : vector<20x128xf32>
    %c0_14 = arith.constant 0 : index
    %c0_15 = arith.constant 0 : index
    %20 = vector.load %arg6[%c0_14, %c0_15] : memref<4x20xf32, #tpu.memory_space<vmem>>, vector<4x20xf32>
    %cst_16 = arith.constant dense<0.000000e+00> : vector<4x128xf32>
    %21 = tpu.matmul %20, %19, %cst_16 {dimension_numbers = #tpu.dot_dimension_numbers<[1], [0], [0], [1], [0, 0, 1, 1], [], []>} : vector<4x20xf32>, vector<20x128xf32>, vector<4x128xf32> -> vector<4x128xf32>
    %c0_17 = arith.constant 0 : index
    %c0_18 = arith.constant 0 : index
    %22 = vector.load %arg7[%c0_17, %c0_18] : memref<4x1xf32, #tpu.memory_space<vmem>>, vector<4x1xf32>
    %23 = vector.broadcast %22 : vector<4x1xf32> to vector<4x128xf32>
    %24 = arith.addf %21, %23 : vector<4x128xf32>
    %c0_19 = arith.constant 0 : index
    %c0_20 = arith.constant 0 : index
    %25 = vector.load %arg8[%c0_19, %c0_20] : memref<4x128xf32, #tpu.memory_space<vmem>>, vector<4x128xf32>
    tpu.vector_store %arg8[%c0_19, %c0_20], %24 {strides = array<i32>} : memref<4x128xf32, #tpu.memory_space<vmem>>, vector<4x128xf32>,
    return
  }
  func.func @transform_0(%arg0: i32) -> (i32, i32) {
    %c0_i32 = arith.constant 0 : i32
    %c0_i32_0 = arith.constant 0 : i32
    return %arg0, %c0_i32 : i32, i32
  }
  func.func @transform_1(%arg0: i32) -> (i32, i32) {
    %c0_i32 = arith.constant 0 : i32
    %c0_i32_0 = arith.constant 0 : i32
    %c0_i32_1 = arith.constant 0 : i32
    return %c0_i32, %c0_i32_0 : i32, i32
  }
  func.func @transform_2(%arg0: i32) -> (i32, i32) {
    %c0_i32 = arith.constant 0 : i32
    %c0_i32_0 = arith.constant 0 : i32
    %c0_i32_1 = arith.constant 0 : i32
    return %c0_i32, %c0_i32_0 : i32, i32
  }
  func.func @transform_3(%arg0: i32) -> (i32, i32) {
    %c0_i32 = arith.constant 0 : i32
    %c0_i32_0 = arith.constant 0 : i32
    %c0_i32_1 = arith.constant 0 : i32
    return %c0_i32, %c0_i32_0 : i32, i32
  }
  func.func @transform_4(%arg0: i32) -> (i32, i32) {
    %c0_i32 = arith.constant 0 : i32
    %c0_i32_0 = arith.constant 0 : i32
    %c0_i32_1 = arith.constant 0 : i32
    return %c0_i32, %c0_i32_0 : i32, i32
  }
  func.func @transform_5(%arg0: i32) -> (i32, i32) {
    %c0_i32 = arith.constant 0 : i32
    %c0_i32_0 = arith.constant 0 : i32
    %c0_i32_1 = arith.constant 0 : i32
    return %c0_i32, %c0_i32_0 : i32, i32
  }
  func.func @transform_6(%arg0: i32) -> (i32, i32) {
    %c0_i32 = arith.constant 0 : i32
    %c0_i32_0 = arith.constant 0 : i32
    %c0_i32_1 = arith.constant 0 : i32
    return %c0_i32, %c0_i32_0 : i32, i32
  }
  func.func @transform_7(%arg0: i32) -> (i32, i32) {
    %c0_i32 = arith.constant 0 : i32
    %c0_i32_0 = arith.constant 0 : i32
    return %c0_i32, %arg0 : i32, i32
  }
}

</mosaic_0001>

<llo_original>
// kernel: tpu_custom_call.1
$region0: #{tpu_custom_call.1}
  #allocation0 [shape = 'u32[]', space=smem, size = 0x4, offset = 0x4, fixed_abs, tag = 'smem constant byte address 0x4 - core index']
  #allocation1 [shape = 'u32[144,128]{1,0:T(1,128)}', space=vmem, size = 0x12000, scoped, tag = 'internal scratch']
  %s0 = inlined_call_operand.vmem [shape: f32[128,8], index: 0, kind: input, shape index: {}]
  %s1 = inlined_call_operand.vmem [shape: f32[20,8], index: 1, kind: input, shape index: {}]
  %s2 = inlined_call_operand.vmem [shape: f32[20,1], index: 2, kind: input, shape index: {}]
  %s3 = inlined_call_operand.vmem [shape: f32[20,20], index: 3, kind: input, shape index: {}]
  %s4 = inlined_call_operand.vmem [shape: f32[20,1], index: 4, kind: input, shape index: {}]
  %s5 = inlined_call_operand.vmem [shape: f32[4,20], index: 5, kind: input, shape index: {}]
  %s6 = inlined_call_operand.vmem [shape: f32[4,1], index: 6, kind: input, shape index: {}]
  %s7 = inlined_call_operand.hbm [shape: f32[4,128], index: 7, kind: output, shape index: {}]
  %s8 = sld [smem:[#allocation0]]
  $region38: #{tpu_custom_call.1} parent=0
    _
  %s10 = ssub.s32 1, %s8
  %s11 = scalar_select 0, %s10, %s8
  $region1: #{tpu_custom_call.1} parent=0
    #allocation2 [shape = 'u8[2048]{0}', space=vmem, size = 0x800, scoped, tag = 'output window, operand 0, single buffered']
    #allocation3 [shape = 's32[1]{0}', space=sflag, size = 0x4, scoped, tag = 'scoped memory for tpu_custom_call.1']
    %12 = vsyncpa [#allocation3], 0
    // Predicated region
    $region2: #{tpu_custom_call.1} parent=1 // pred_check
      _
    $region3: #{tpu_custom_call.1} parent=1 // pred_check_branch
      %14 = sbr.rel (0) target = $region5
    $region4: #{tpu_custom_call.1} parent=1 // pred_region
      _
    $region5: #{tpu_custom_call.1} parent=1 // pred_fallthru
      _
    // Predicated region
    $region6: #{tpu_custom_call.1} parent=1 // pred_check
      _
    $region7: #{tpu_custom_call.1} parent=1 // pred_check_branch
      %16 = sbr.rel (0) target = $region9
    $region8: #{tpu_custom_call.1} parent=1 // pred_region
      _
    $region9: #{tpu_custom_call.1} parent=1 // pred_fallthru
      _
    // Predicated region
    $region10: #{tpu_custom_call.1} parent=1 // pred_check
      _
    $region11: #{tpu_custom_call.1} parent=1 // pred_check_branch
      %18 = sbr.rel (0) target = $region13
    $region12: #{tpu_custom_call.1} parent=1 // pred_region
      _
    $region13: #{tpu_custom_call.1} parent=1 // pred_fallthru
      _
    // Predicated region
    $region14: #{tpu_custom_call.1} parent=1 // pred_check
      _
    $region15: #{tpu_custom_call.1} parent=1 // pred_check_branch
      %20 = sbr.rel (0) target = $region17
    $region16: #{tpu_custom_call.1} parent=1 // pred_region
      _
    $region17: #{tpu_custom_call.1} parent=1 // pred_fallthru
      _
    // Predicated region
    $region18: #{tpu_custom_call.1} parent=1 // pred_check
      _
    $region19: #{tpu_custom_call.1} parent=1 // pred_check_branch
      %22 = sbr.rel (0) target = $region21
    $region20: #{tpu_custom_call.1} parent=1 // pred_region
      _
    $region21: #{tpu_custom_call.1} parent=1 // pred_fallthru
      _
    // Predicated region
    $region22: #{tpu_custom_call.1} parent=1 // pred_check
      _
    $region23: #{tpu_custom_call.1} parent=1 // pred_check_branch
      %24 = sbr.rel (0) target = $region25
    $region24: #{tpu_custom_call.1} parent=1 // pred_region
      _
    $region25: #{tpu_custom_call.1} parent=1 // pred_fallthru
      _
    // Predicated region
    $region26: #{tpu_custom_call.1} parent=1 // pred_check
      _
    $region27: #{tpu_custom_call.1} parent=1 // pred_check_branch
      %26 = sbr.rel (0) target = $region29
    $region28: #{tpu_custom_call.1} parent=1 // pred_region
      _
    $region29: #{tpu_custom_call.1} parent=1 // pred_fallthru
      _
    %v27 = vld [vmem:[%s0] sm:$0xff]
    %v28 = vld [vmem:[%s0 + $0x8] sm:$0xff]
    %v29 = vld [vmem:[%s0 + $0x10] sm:$0xff]
    %v30 = vld [vmem:[%s0 + $0x18] sm:$0xff]
    %v31 = vld [vmem:[%s0 + $0x20] sm:$0xff]
    %v32 = vld [vmem:[%s0 + $0x28] sm:$0xff]
    %v33 = vld [vmem:[%s0 + $0x30] sm:$0xff]
    %v34 = vld [vmem:[%s0 + $0x38] sm:$0xff]
    %v35 = vld [vmem:[%s0 + $0x40] sm:$0xff]
    %v36 = vld [vmem:[%s0 + $0x48] sm:$0xff]
    %v37 = vld [vmem:[%s0 + $0x50] sm:$0xff]
    %v38 = vld [vmem:[%s0 + $0x58] sm:$0xff]
    %v39 = vld [vmem:[%s0 + $0x60] sm:$0xff]
    %v40 = vld [vmem:[%s0 + $0x68] sm:$0xff]
    %v41 = vld [vmem:[%s0 + $0x70] sm:$0xff]
    %v42 = vld [vmem:[%s0 + $0x78] sm:$0xff]
    %v43 = vld [vmem:[%s1] sm:$0xff]
    %v44 = vld [vmem:[%s1 + $0x8] sm:$0xff]
    %v45 = vld [vmem:[%s1 + $0x10] sm:$0xf]
    %v46 = vld [vmem:[%s2] sm:$0xff]
    %v47 = vld [vmem:[%s2 + $0x8] sm:$0xff]
    %v48 = vld [vmem:[%s2 + $0x10] sm:$0xf]
    %50 = vset.pattern.permute.xlu0 0
    %51 = vperm.xlu0 %50, %v46
    %v52 = vpop.permute.xlu0 %51
    %55 = vset.pattern.permute.xlu0 0
    %56 = vperm.xlu0 %55, %v47
    %v57 = vpop.permute.xlu0 %56
    %60 = vset.pattern.permute.xlu0 0
    %61 = vperm.xlu0 %60, %v48
    %v62 = vpop.permute.xlu0 %61
    %vm64 = vcmask 64512
    %v66 = vsel %vm64, %v43, 0
    %v69 = vsel %vm64, %v44, 0
    %v72 = vsel %vm64, %v45, 0
    %v75 = vsel %vm64, %v27, 0
    %v78 = vsel %vm64, %v28, 0
    %v81 = vsel %vm64, %v29, 0
    %v84 = vsel %vm64, %v30, 0
    %v87 = vsel %vm64, %v31, 0
    %v90 = vsel %vm64, %v32, 0
    %v93 = vsel %vm64, %v33, 0
    %v96 = vsel %vm64, %v34, 0
    %v99 = vsel %vm64, %v35, 0
    %v102 = vsel %vm64, %v36, 0
    %v105 = vsel %vm64, %v37, 0
    %v108 = vsel %vm64, %v38, 0
    %v111 = vsel %vm64, %v39, 0
    %v114 = vsel %vm64, %v40, 0
    %v117 = vsel %vm64, %v41, 0
    %v120 = vsel %vm64, %v42, 0
    %122 = vmatprep.subr.mxu0 0.0
    %123 = vmatpush1.xpose.msra.mxu0 %v75
    %124 = vmatprep.subr.mxu0 0.0
    %125 = vmatpush1.xpose.msra.mxu0 %v78
    %126 = vmatprep.subr.mxu0 0.0
    %127 = vmatpush1.xpose.msra.mxu0 %v81
    %128 = vmatprep.subr.mxu0 0.0
    %129 = vmatpush1.xpose.msra.mxu0 %v84
    %130 = vmatprep.subr.mxu0 0.0
    %131 = vmatpush1.xpose.msra.mxu0 %v87
    %132 = vmatprep.subr.mxu0 0.0
    %133 = vmatpush1.xpose.msra.mxu0 %v90
    %134 = vmatprep.subr.mxu0 0.0
    %135 = vmatpush1.xpose.msra.mxu0 %v93
    %136 = vmatprep.subr.mxu0 0.0
    %137 = vmatpush1.xpose.msra.mxu0 %v96
    %138 = vmatprep.subr.mxu0 0.0
    %139 = vmatpush1.xpose.msra.mxu0 %v99
    %140 = vmatprep.subr.mxu0 0.0
    %141 = vmatpush1.xpose.msra.mxu0 %v102
    %142 = vmatprep.subr.mxu0 0.0
    %143 = vmatpush1.xpose.msra.mxu0 %v105
    %144 = vmatprep.subr.mxu0 0.0
    %145 = vmatpush1.xpose.msra.mxu0 %v108
    %146 = vmatprep.subr.mxu0 0.0
    %147 = vmatpush1.xpose.msra.mxu0 %v111
    %148 = vmatprep.subr.mxu0 0.0
    %149 = vmatpush1.xpose.msra.mxu0 %v114
    %150 = vmatprep.subr.mxu0 0.0
    %151 = vmatpush1.xpose.msra.mxu0 %v117
    %152 = vmatprep.subr.mxu0 0.0
    %153 = vmatpush1.xpose.msra.mxu0 %v120
    %154 = vmatprep.subr.mxu0 0.0
    %155 = vmatpush1.xpose.msra.mxu0 0.0
    %156 = vmatprep.subr.mxu0 0.0
    %157 = vmatpush1.xpose.msra.mxu0 0.0
    %158 = vmatprep.subr.mxu0 0.0
    %159 = vmatpush1.xpose.msra.mxu0 0.0
    %160 = vmatprep.subr.mxu0 0.0
    %161 = vmatpush1.xpose.msra.mxu0 0.0
    %162 = vmatprep.subr.mxu0 0.0
    %163 = vmatpush1.xpose.msra.mxu0 0.0
    %164 = vmatprep.subr.mxu0 0.0
    %165 = vmatpush1.xpose.msra.mxu0 0.0
    %166 = vmatprep.subr.mxu0 0.0
    %167 = vmatpush1.xpose.msra.mxu0 0.0
    %168 = vmatprep.subr.mxu0 0.0
    %169 = vmatpush1.xpose.msra.mxu0 0.0
    %170 = vmatprep.subr.mxu0 0.0
    %171 = vmatpush1.xpose.msra.mxu0 0.0
    %172 = vmatprep.subr.mxu0 0.0
    %173 = vmatpush1.xpose.msra.mxu0 0.0
    %174 = vmatprep.subr.mxu0 0.0
    %175 = vmatpush1.xpose.msra.mxu0 0.0
    %176 = vmatprep.subr.mxu0 0.0
    %177 = vmatpush1.xpose.msra.mxu0 0.0
    %178 = vmatprep.subr.mxu0 0.0
    %179 = vmatpush1.xpose.msra.mxu0 0.0
    %180 = vmatprep.subr.mxu0 0.0
    %181 = vmatpush1.xpose.msra.mxu0 0.0
    %182 = vmatprep.subr.mxu0 0.0
    %183 = vmatpush1.xpose.msra.mxu0 0.0
    %184 = vmatprep.subr.mxu0 0.0
    %185 = vmatpush1.xpose.msra.mxu0 0.0
    %186 = vmatprep.mubr.f32.mxu0 0.0
    %187 = vmatmul.mubr.f32.gmra.mrb[0].mxu0 %v66
    %v188 = vpop.f32.mrb[0].mxu0
    %v189 = vadd.f32 %v52, %v188
    %v190 = vpop.f32.mrb[0].mxu0
    %191 = vmatprep.mubr.f32.mxu0 0.0
    %192 = vmatmul.mubr.f32.gmra.mrb[0].mxu0 %v69
    %v193 = vpop.f32.mrb[0].mxu0
    %v194 = vadd.f32 %v57, %v193
    %v195 = vpop.f32.mrb[0].mxu0
    %196 = vmatprep.mubr.f32.mxu0 0.0
    %197 = vmatmul.mubr.f32.gmra.mrb[0].mxu0 %v72
    %v198 = vpop.f32.mrb[0].mxu0
    %v199 = vadd.f32 %v62, %v198
    %v200 = vpop.f32.mrb[0].mxu0
    %201 = vdwg.mxu0
    %v202 = vmax.f32 %v189, 0.0
    %v203 = vmax.f32 %v194, 0.0
    %v204 = vmax.f32 %v199, 0.0
    %v205 = vld [vmem:[%s3] sm:$0xff]
    %v206 = vld [vmem:[%s3 + $0x8] sm:$0xff]
    %v207 = vld [vmem:[%s3 + $0x10] sm:$0xf]
    %v208 = vld [vmem:[%s4] sm:$0xff]
    %v209 = vld [vmem:[%s4 + $0x8] sm:$0xff]
    %v210 = vld [vmem:[%s4 + $0x10] sm:$0xf]
    %212 = vset.pattern.permute.xlu0 0
    %213 = vperm.xlu0 %212, %v208
    %v214 = vpop.permute.xlu0 %213
    %217 = vset.pattern.permute.xlu0 0
    %218 = vperm.xlu0 %217, %v209
    %v219 = vpop.permute.xlu0 %218
    %222 = vset.pattern.permute.xlu0 0
    %223 = vperm.xlu0 %222, %v210
    %v224 = vpop.permute.xlu0 %223
    %vm226 = vcmask 162816
    %v228 = vsel %vm226, %v205, 0
    %v231 = vsel %vm226, %v206, 0
    %v234 = vsel %vm226, %v207, 0
    %vm236 = vcmask 1043456
    %v238 = vsel %vm236, %v204, 0
    %240 = vmatprep.subr.mxu0 0.0
    %241 = vmatpush1.msra.mxu0 %v202
    %242 = vmatprep.subr.mxu0 0.0
    %243 = vmatpush1.msra.mxu0 %v203
    %244 = vmatprep.subr.mxu0 0.0
    %245 = vmatpush1.msra.mxu0 %v238
    %246 = vmatprep.subr.mxu0 0.0
    %247 = vmatpush1.msra.mxu0 0.0
    %248 = vmatprep.subr.mxu0 0.0
    %249 = vmatpush1.msra.mxu0 0.0
    %250 = vmatprep.subr.mxu0 0.0
    %251 = vmatpush1.msra.mxu0 0.0
    %252 = vmatprep.subr.mxu0 0.0
    %253 = vmatpush1.msra.mxu0 0.0
    %254 = vmatprep.subr.mxu0 0.0
    %255 = vmatpush1.msra.mxu0 0.0
    %256 = vmatprep.subr.mxu0 0.0
    %257 = vmatpush1.msra.mxu0 0.0
    %258 = vmatprep.subr.mxu0 0.0
    %259 = vmatpush1.msra.mxu0 0.0
    %260 = vmatprep.subr.mxu0 0.0
    %261 = vmatpush1.msra.mxu0 0.0
    %262 = vmatprep.subr.mxu0 0.0
    %263 = vmatpush1.msra.mxu0 0.0
    %264 = vmatprep.subr.mxu0 0.0
    %265 = vmatpush1.msra.mxu0 0.0
    %266 = vmatprep.subr.mxu0 0.0
    %267 = vmatpush1.msra.mxu0 0.0
    %268 = vmatprep.subr.mxu0 0.0
    %269 = vmatpush1.msra.mxu0 0.0
    %270 = vmatprep.subr.mxu0 0.0
    %271 = vmatpush1.msra.mxu0 0.0
    %272 = vmatprep.subr.mxu0 0.0
    %273 = vmatpush1.msra.mxu0 0.0
    %274 = vmatprep.subr.mxu0 0.0
    %275 = vmatpush1.msra.mxu0 0.0
    %276 = vmatprep.subr.mxu0 0.0
    %277 = vmatpush1.msra.mxu0 0.0
    %278 = vmatprep.subr.mxu0 0.0
    %279 = vmatpush1.msra.mxu0 0.0
    %280 = vmatprep.subr.mxu0 0.0
    %281 = vmatpush1.msra.mxu0 0.0
    %282 = vmatprep.subr.mxu0 0.0
    %283 = vmatpush1.msra.mxu0 0.0
    %284 = vmatprep.subr.mxu0 0.0
    %285 = vmatpush1.msra.mxu0 0.0
    %286 = vmatprep.subr.mxu0 0.0
    %287 = vmatpush1.msra.mxu0 0.0
    %288 = vmatprep.subr.mxu0 0.0
    %289 = vmatpush1.msra.mxu0 0.0
    %290 = vmatprep.subr.mxu0 0.0
    %291 = vmatpush1.msra.mxu0 0.0
    %292 = vmatprep.subr.mxu0 0.0
    %293 = vmatpush1.msra.mxu0 0.0
    %294 = vmatprep.subr.mxu0 0.0
    %295 = vmatpush1.msra.mxu0 0.0
    %296 = vmatprep.subr.mxu0 0.0
    %297 = vmatpush1.msra.mxu0 0.0
    %298 = vmatprep.subr.mxu0 0.0
    %299 = vmatpush1.msra.mxu0 0.0
    %300 = vmatprep.subr.mxu0 0.0
    %301 = vmatpush1.msra.mxu0 0.0
    %302 = vmatprep.subr.mxu0 0.0
    %303 = vmatpush1.msra.mxu0 0.0
    %304 = vmatprep.mubr.f32.mxu0 0.0
    %305 = vmatmul.mubr.f32.gmra.mrb[0].mxu0 %v228
    %v306 = vpop.f32.mrb[0].mxu0
    %v307 = vadd.f32 %v214, %v306
    %v308 = vpop.f32.mrb[0].mxu0
    %309 = vmatprep.mubr.f32.mxu0 0.0
    %310 = vmatmul.mubr.f32.gmra.mrb[0].mxu0 %v231
    %v311 = vpop.f32.mrb[0].mxu0
    %v312 = vadd.f32 %v219, %v311
    %v313 = vpop.f32.mrb[0].mxu0
    %314 = vmatprep.mubr.f32.mxu0 0.0
    %315 = vmatmul.mubr.f32.gmra.mrb[0].mxu0 %v234
    %v316 = vpop.f32.mrb[0].mxu0
    %v317 = vadd.f32 %v224, %v316
    %v318 = vpop.f32.mrb[0].mxu0
    %319 = vdwg.mxu0
    %v320 = vmax.f32 %v307, 0.0
    %v321 = vmax.f32 %v312, 0.0
    %v322 = vmax.f32 %v317, 0.0
    %v324 = vsel %vm236, %v322, 0
    %326 = vmatprep.subr.mxu0 0.0
    %327 = vmatpush1.msra.mxu0 %v320
    %328 = vmatprep.subr.mxu0 0.0
    %329 = vmatpush1.msra.mxu0 %v321
    %330 = vmatprep.subr.mxu0 0.0
    %331 = vmatpush1.msra.mxu0 %v324
    %332 = vmatprep.subr.mxu0 0.0
    %333 = vmatpush1.msra.mxu0 0.0
    %334 = vmatprep.subr.mxu0 0.0
    %335 = vmatpush1.msra.mxu0 0.0
    %336 = vmatprep.subr.mxu0 0.0
    %337 = vmatpush1.msra.mxu0 0.0
    %338 = vmatprep.subr.mxu0 0.0
    %339 = vmatpush1.msra.mxu0 0.0
    %340 = vmatprep.subr.mxu0 0.0
    %341 = vmatpush1.msra.mxu0 0.0
    %342 = vmatprep.subr.mxu0 0.0
    %343 = vmatpush1.msra.mxu0 0.0
    %344 = vmatprep.subr.mxu0 0.0
    %345 = vmatpush1.msra.mxu0 0.0
    %346 = vmatprep.subr.mxu0 0.0
    %347 = vmatpush1.msra.mxu0 0.0
    %348 = vmatprep.subr.mxu0 0.0
    %349 = vmatpush1.msra.mxu0 0.0
    %350 = vmatprep.subr.mxu0 0.0
    %351 = vmatpush1.msra.mxu0 0.0
    %352 = vmatprep.subr.mxu0 0.0
    %353 = vmatpush1.msra.mxu0 0.0
    %354 = vmatprep.subr.mxu0 0.0
    %355 = vmatpush1.msra.mxu0 0.0
    %356 = vmatprep.subr.mxu0 0.0
    %357 = vmatpush1.msra.mxu0 0.0
    %358 = vmatprep.subr.mxu0 0.0
    %359 = vmatpush1.msra.mxu0 0.0
    %360 = vmatprep.subr.mxu0 0.0
    %361 = vmatpush1.msra.mxu0 0.0
    %362 = vmatprep.subr.mxu0 0.0
    %363 = vmatpush1.msra.mxu0 0.0
    %364 = vmatprep.subr.mxu0 0.0
    %365 = vmatpush1.msra.mxu0 0.0
    %366 = vmatprep.subr.mxu0 0.0
    %367 = vmatpush1.msra.mxu0 0.0
    %368 = vmatprep.subr.mxu0 0.0
    %369 = vmatpush1.msra.mxu0 0.0
    %370 = vmatprep.subr.mxu0 0.0
    %371 = vmatpush1.msra.mxu0 0.0
    %372 = vmatprep.subr.mxu0 0.0
    %373 = vmatpush1.msra.mxu0 0.0
    %374 = vmatprep.subr.mxu0 0.0
    %375 = vmatpush1.msra.mxu0 0.0
    %376 = vmatprep.subr.mxu0 0.0
    %377 = vmatpush1.msra.mxu0 0.0
    %378 = vmatprep.subr.mxu0 0.0
    %379 = vmatpush1.msra.mxu0 0.0
    %380 = vmatprep.subr.mxu0 0.0
    %381 = vmatpush1.msra.mxu0 0.0
    %382 = vmatprep.subr.mxu0 0.0
    %383 = vmatpush1.msra.mxu0 0.0
    %384 = vmatprep.subr.mxu0 0.0
    %385 = vmatpush1.msra.mxu0 0.0
    %386 = vmatprep.subr.mxu0 0.0
    %387 = vmatpush1.msra.mxu0 0.0
    %388 = vmatprep.subr.mxu0 0.0
    %389 = vmatpush1.msra.mxu0 0.0
    %390 = vmatprep.mubr.f32.mxu0 0.0
    %391 = vmatmul.mubr.f32.gmra.mrb[0].mxu0 %v228
    %v392 = vpop.f32.mrb[0].mxu0
    %v393 = vadd.f32 %v214, %v392
    %v394 = vpop.f32.mrb[0].mxu0
    %395 = vmatprep.mubr.f32.mxu0 0.0
    %396 = vmatmul.mubr.f32.gmra.mrb[0].mxu0 %v231
    %v397 = vpop.f32.mrb[0].mxu0
    %v398 = vadd.f32 %v219, %v397
    %v399 = vpop.f32.mrb[0].mxu0
    %400 = vmatprep.mubr.f32.mxu0 0.0
    %401 = vmatmul.mubr.f32.gmra.mrb[0].mxu0 %v234
    %v402 = vpop.f32.mrb[0].mxu0
    %v403 = vadd.f32 %v224, %v402
    %v404 = vpop.f32.mrb[0].mxu0
    %405 = vdwg.mxu0
    %v406 = vmax.f32 %v393, 0.0
    %v407 = vmax.f32 %v398, 0.0
    %v408 = vmax.f32 %v403, 0.0
    %v409 = vld [vmem:[%s5] sm:$0xf]
    %v410 = vld [vmem:[%s6] sm:$0xf]
    %412 = vset.pattern.permute.xlu0 0
    %413 = vperm.xlu0 %412, %v410
    %v414 = vpop.permute.xlu0 %413
    %v417 = vsel %vm226, %v409, 0
    %v420 = vsel %vm236, %v408, 0
    %422 = vmatprep.subr.mxu0 0.0
    %423 = vmatpush1.msra.mxu0 %v406
    %424 = vmatprep.subr.mxu0 0.0
    %425 = vmatpush1.msra.mxu0 %v407
    %426 = vmatprep.subr.mxu0 0.0
    %427 = vmatpush1.msra.mxu0 %v420
    %428 = vmatprep.subr.mxu0 0.0
    %429 = vmatpush1.msra.mxu0 0.0
    %430 = vmatprep.subr.mxu0 0.0
    %431 = vmatpush1.msra.mxu0 0.0
    %432 = vmatprep.subr.mxu0 0.0
    %433 = vmatpush1.msra.mxu0 0.0
    %434 = vmatprep.subr.mxu0 0.0
    %435 = vmatpush1.msra.mxu0 0.0
    %436 = vmatprep.subr.mxu0 0.0
    %437 = vmatpush1.msra.mxu0 0.0
    %438 = vmatprep.subr.mxu0 0.0
    %439 = vmatpush1.msra.mxu0 0.0
    %440 = vmatprep.subr.mxu0 0.0
    %441 = vmatpush1.msra.mxu0 0.0
    %442 = vmatprep.subr.mxu0 0.0
    %443 = vmatpush1.msra.mxu0 0.0
    %444 = vmatprep.subr.mxu0 0.0
    %445 = vmatpush1.msra.mxu0 0.0
    %446 = vmatprep.subr.mxu0 0.0
    %447 = vmatpush1.msra.mxu0 0.0
    %448 = vmatprep.subr.mxu0 0.0
    %449 = vmatpush1.msra.mxu0 0.0
    %450 = vmatprep.subr.mxu0 0.0
    %451 = vmatpush1.msra.mxu0 0.0
    %452 = vmatprep.subr.mxu0 0.0
    %453 = vmatpush1.msra.mxu0 0.0
    %454 = vmatprep.subr.mxu0 0.0
    %455 = vmatpush1.msra.mxu0 0.0
    %456 = vmatprep.subr.mxu0 0.0
    %457 = vmatpush1.msra.mxu0 0.0
    %458 = vmatprep.subr.mxu0 0.0
    %459 = vmatpush1.msra.mxu0 0.0
    %460 = vmatprep.subr.mxu0 0.0
    %461 = vmatpush1.msra.mxu0 0.0
    %462 = vmatprep.subr.mxu0 0.0
    %463 = vmatpush1.msra.mxu0 0.0
    %464 = vmatprep.subr.mxu0 0.0
    %465 = vmatpush1.msra.mxu0 0.0
    %466 = vmatprep.subr.mxu0 0.0
    %467 = vmatpush1.msra.mxu0 0.0
    %468 = vmatprep.subr.mxu0 0.0
    %469 = vmatpush1.msra.mxu0 0.0
    %470 = vmatprep.subr.mxu0 0.0
    %471 = vmatpush1.msra.mxu0 0.0
    %472 = vmatprep.subr.mxu0 0.0
    %473 = vmatpush1.msra.mxu0 0.0
    %474 = vmatprep.subr.mxu0 0.0
    %475 = vmatpush1.msra.mxu0 0.0
    %476 = vmatprep.subr.mxu0 0.0
    %477 = vmatpush1.msra.mxu0 0.0
    %478 = vmatprep.subr.mxu0 0.0
    %479 = vmatpush1.msra.mxu0 0.0
    %480 = vmatprep.subr.mxu0 0.0
    %481 = vmatpush1.msra.mxu0 0.0
    %482 = vmatprep.subr.mxu0 0.0
    %483 = vmatpush1.msra.mxu0 0.0
    %484 = vmatprep.subr.mxu0 0.0
    %485 = vmatpush1.msra.mxu0 0.0
    %486 = vmatprep.mubr.f32.mxu0 0.0
    %487 = vmatmul.mubr.f32.gmra.mrb[0].mxu0 %v417
    %v488 = vpop.f32.mrb[0].mxu0
    %v489 = vadd.f32 %v414, %v488
    %v490 = vpop.f32.mrb[0].mxu0
    %491 = vdwg.mxu0
    %492 = vst [vmem:[#allocation2] sm:$0xf] %v489
    // Predicated region
    $region30: #{tpu_custom_call.1} parent=1 // pred_check
      _
    $region31: #{tpu_custom_call.1} parent=1 // pred_check_branch
      %494 = sbr.rel (0) target = $region33
    $region32: #{tpu_custom_call.1} parent=1 // pred_region
      %s496 = ssub.s32 64, 64
      %497 = vsyncadd [#allocation3], %s496
      %s499 = sshll.u32 [#allocation2], 4
      %s500 = int_to_ptr.vmem [resolvable:$true] %s499
      %502 = dma.vmem_to_hbm [thread:$0]  %s500, 64, %s7, [#allocation3]
    $region33: #{tpu_custom_call.1} parent=1 // pred_fallthru
      _
    // Predicated region
    $region34: #{tpu_custom_call.1} parent=1 // pred_check
      _
    $region35: #{tpu_custom_call.1} parent=1 // pred_check_branch
      %504 = sbr.rel (0) target = $region37
    $region36: #{tpu_custom_call.1} parent=1 // pred_region
      %505 = dma.done [#allocation3], 64
    $region37: #{tpu_custom_call.1} parent=1 // pred_fallthru
      _
    %506 = vsyncpa [#allocation3], 1

</llo_original>
